<compile_context>
chip_gen: v7x
topology: tpu7x:2x2x1
jax: 0.10.0
libtpu: 0.0.40
codegen_flags: <defaults>
</compile_context>

<pallas_src>
import functools

import jax
import jax.numpy as jnp
from jax.experimental import pallas as pl
from jax.experimental.pallas import tpu as pltpu

_LANES = 128


def _logsqnl_kernel(z_ref, o_ref):
    z = z_ref[...]
    # Fused middle branches (factored form saves one vmul on the VPU).
    out = 0.5 + z * (0.5 - 0.25 * jnp.abs(z))
    # Saturation branches (strict inequalities, matching the PyTorch masks;
    # the function is intentionally discontinuous at |z| = 2, so no clip()).
    out = jnp.where(z > 2.0, 1.0, out)
    out = jnp.where(z < -2.0, 0.0, out)
    o_ref[...] = out.astype(o_ref.dtype)


def _logsqnl_elementwise(z):
    # Plain-jnp path for the <128-element tail / tiny inputs.
    out = 0.5 + z * (0.5 - 0.25 * jnp.abs(z))
    out = jnp.where(z > 2.0, 1.0, out)
    out = jnp.where(z < -2.0, 0.0, out)
    return out.astype(z.dtype)


def _cdiv(a: int, b: int) -> int:
    return -(-a // b)


def _round_up(x: int, m: int) -> int:
    return ((x + m - 1) // m) * m


def _choose_block_rows(rows: int, itemsize: int, target_block_bytes: int) -> int:
    """Pick block rows: byte-targeted, >=4 grid steps when possible, >=32 rows."""
    # Rows that hit the byte target per buffer (multiple of 32 sublanes so the
    # block shape is legal for f32 / bf16 / int8 packing alike).
    target_rows = max(32, (target_block_bytes // (_LANES * itemsize)) // 32 * 32)
    # Guarantee >= 4 grid steps when the input is big enough (pipelining on all
    # gens, >=2 steps per v7x TensorCore), with a 256-row floor so blocks never
    # get so small that the per-step overhead dominates.
    quarter_rows = max(_round_up(_cdiv(rows, 4), 32), 256)
    block_rows = min(target_rows, quarter_rows)
    # Never allocate a block (much) larger than the whole array.
    block_rows = min(block_rows, _round_up(rows, 32))
    return max(block_rows, 32)


@functools.partial(jax.jit, static_argnames=("target_block_bytes",))
def logsqnl(x: jax.Array, *, target_block_bytes: int = 4 * 1024 * 1024) -> jax.Array:
    """Apply LogSQNL elementwise. Any shape; same shape/dtype out.

    target_block_bytes=4 MiB per buffer -> with in+out double-buffering that is
    ~16 MiB of VMEM; we set vmem_limit_bytes explicitly so this is legal on
    v5e (16 MiB scoped default) and stays well under v7x's 64 MiB physical VMEM.
    """
    # TODO(synk): the PyTorch `inplace=True` variant has no JAX equivalent;
    # callers wanting to reuse the input buffer should donate it via jit.
    orig_shape = x.shape
    dtype = x.dtype
    itemsize = jnp.dtype(dtype).itemsize

    flat = x.reshape(-1)
    n = flat.shape[0]
    if n == 0:
        return x

    rem = n % _LANES
    n_main = n - rem

    if n_main == 0:
        # Fewer than 128 elements: not worth a kernel launch.
        return _logsqnl_elementwise(flat).reshape(orig_shape)

    main = flat[:n_main] if rem else flat
    rows = n_main // _LANES
    x2d = main.reshape(rows, _LANES)

    block_rows = _choose_block_rows(rows, itemsize, target_block_bytes)
    grid = (pl.cdiv(rows, block_rows),)

    block_bytes = block_rows * _LANES * itemsize
    # in + out, double-buffered, plus slack; clamp to a range that is safe on
    # every generation (v5e/v6e: 128 MiB physical, v7x: 64 MiB physical).
    vmem_needed = 4 * block_bytes
    vmem_limit = min(max(vmem_needed + (4 << 20), 32 << 20), 48 << 20)

    out2d = pl.pallas_call(
        _logsqnl_kernel,
        out_shape=jax.ShapeDtypeStruct((rows, _LANES), dtype),
        grid_spec=pltpu.PrefetchScalarGridSpec(
            num_scalar_prefetch=0,
            grid=grid,
            in_specs=[pl.BlockSpec((block_rows, _LANES), lambda i: (i, 0))],
            out_specs=pl.BlockSpec((block_rows, _LANES), lambda i: (i, 0)),
        ),
        compiler_params=pltpu.CompilerParams(
            # Parallel grid axis lets v7x's two TensorCores split the stream;
            # neutral on v5e/v6e.
            dimension_semantics=("parallel",),
            vmem_limit_bytes=vmem_limit,
        ),
        cost_estimate=pl.CostEstimate(
            flops=6 * n_main,
            transcendentals=0,
            bytes_accessed=2 * n_main * itemsize,
        ),
    )(x2d)

    out_main = out2d.reshape(-1)
    if rem:
        out_tail = _logsqnl_elementwise(flat[n_main:])
        out_flat = jnp.concatenate([out_main, out_tail])
    else:
        out_flat = out_main
    return out_flat.reshape(orig_shape)


def _logsqnl_ref(z):
    # Pure-JAX reference mirroring the PyTorch piecewise definition exactly.
    zsq4 = z * z / 4.0
    out = jnp.where(z >= 0, 0.5 * z - zsq4 + 0.5, 0.5 * z + zsq4 + 0.5)
    out = jnp.where(z > 2.0, 1.0, out)
    out = jnp.where(z < -2.0, 0.0, out)
    return out.astype(z.dtype)


if __name__ == "__main__":
    key = jax.random.PRNGKey(0)
    k0, k1, k2 = jax.random.split(key, 3)

    # Primary: small NCHW activation, lane-aligned (2*4*16*16 = 2048 = 16*128).
    x = jax.random.normal(k0, (2, 4, 16, 16), dtype=jnp.float32) * 2.0
    y = jax.block_until_ready(logsqnl(x))
    assert y.shape == x.shape and y.dtype == x.dtype
    assert jnp.allclose(y, _logsqnl_ref(x), atol=1e-6, rtol=1e-6)

    # Non-lane-aligned shape: exercises the aligned-prefix + jnp-tail path.
    x2 = jax.random.normal(k1, (3, 5, 37, 41), dtype=jnp.float32) * 3.0
    y2 = jax.block_until_ready(logsqnl(x2))
    assert jnp.allclose(y2, _logsqnl_ref(x2), atol=1e-6, rtol=1e-6)

    # Larger aligned shape: exercises a multi-step grid (>=4 blocks).
    x3 = jax.random.normal(k2, (256, 1024), dtype=jnp.float32) * 4.0
    y3 = jax.block_until_ready(logsqnl(x3))
    assert jnp.allclose(y3, _logsqnl_ref(x3), atol=1e-6, rtol=1e-6)

    # Exact boundary / saturation values (spec is discontinuous at |z| = 2).
    xb = jnp.tile(
        jnp.array([-3.0, -2.0, -1.0, 0.0, 1.0, 2.0, 2.5, 0.5], jnp.float32), 128
    ).reshape(8, 128)
    yb = jax.block_until_ready(logsqnl(xb))
    assert jnp.allclose(yb, _logsqnl_ref(xb), atol=1e-6, rtol=1e-6)

    print("KERNEL_OK")
</pallas_src>

<mosaic_0001>
module attributes {stable_mosaic.version = 11 : i64} {
  func.func @_logsqnl_kernel(%arg0: i32, %arg1: memref<32x128xf32, #tpu.memory_space<vmem>>, %arg2: memref<32x128xf32, #tpu.memory_space<vmem>>) attributes {dimension_semantics = [#tpu.dimension_semantics<parallel>], iteration_bounds = array<i64: 1>, scalar_prefetch = 0 : i64, scratch_operands = 0 : i64, tpu.core_type = #tpu.core_type<tc>, window_params = [{transform_indices = @transform_0, window_bounds = array<i64: 32, 128>}, {transform_indices = @transform_1, window_bounds = array<i64: 32, 128>}]} {
    %c0 = arith.constant 0 : index
    %c0_0 = arith.constant 0 : index
    %0 = vector.load %arg1[%c0, %c0_0] : memref<32x128xf32, #tpu.memory_space<vmem>>, vector<32x128xf32>
    %1 = math.absf %0 : vector<32x128xf32>
    %cst = arith.constant 2.500000e-01 : f32
    %2 = vector.broadcast %cst : f32 to vector<32x128xf32>
    %3 = arith.mulf %2, %1 : vector<32x128xf32>
    %cst_1 = arith.constant 5.000000e-01 : f32
    %4 = vector.broadcast %cst_1 : f32 to vector<32x128xf32>
    %5 = arith.subf %4, %3 : vector<32x128xf32>
    %6 = arith.mulf %0, %5 : vector<32x128xf32>
    %cst_2 = arith.constant 5.000000e-01 : f32
    %7 = vector.broadcast %cst_2 : f32 to vector<32x128xf32>
    %8 = arith.addf %7, %6 : vector<32x128xf32>
    %cst_3 = arith.constant 2.000000e+00 : f32
    %9 = vector.broadcast %cst_3 : f32 to vector<32x128xf32>
    %10 = arith.cmpf ogt, %0, %9 : vector<32x128xf32>
    %cst_4 = arith.constant 1.000000e+00 : f32
    %11 = vector.broadcast %cst_4 : f32 to vector<32x128xf32>
    %12 = arith.select %10, %11, %8 : vector<32x128xi1>, vector<32x128xf32>
    %cst_5 = arith.constant -2.000000e+00 : f32
    %13 = vector.broadcast %cst_5 : f32 to vector<32x128xf32>
    %14 = arith.cmpf olt, %0, %13 : vector<32x128xf32>
    %cst_6 = arith.constant 0.000000e+00 : f32
    %15 = vector.broadcast %cst_6 : f32 to vector<32x128xf32>
    %16 = arith.select %14, %15, %12 : vector<32x128xi1>, vector<32x128xf32>
    %c0_7 = arith.constant 0 : index
    %c0_8 = arith.constant 0 : index
    %17 = vector.load %arg2[%c0_7, %c0_8] : memref<32x128xf32, #tpu.memory_space<vmem>>, vector<32x128xf32>
    tpu.vector_store %arg2[%c0_7, %c0_8], %16 {strides = array<i32>} : memref<32x128xf32, #tpu.memory_space<vmem>>, vector<32x128xf32>,
    return
  }
  func.func @transform_0(%arg0: i32) -> (i32, i32) {
    %c0_i32 = arith.constant 0 : i32
    %c0_i32_0 = arith.constant 0 : i32
    return %arg0, %c0_i32 : i32, i32
  }
  func.func @transform_1(%arg0: i32) -> (i32, i32) {
    %c0_i32 = arith.constant 0 : i32
    %c0_i32_0 = arith.constant 0 : i32
    return %arg0, %c0_i32 : i32, i32
  }
}

</mosaic_0001>

<llo_original>
// kernel: logsqnl.1
$region0: #{logsqnl.1}
  #allocation0 [shape = 'u32[]', space=smem, size = 0x4, offset = 0x4, fixed_abs, tag = 'smem constant byte address 0x4 - core index']
  #allocation1 [shape = 'u32[144,128]{1,0:T(1,128)}', space=vmem, size = 0x12000, scoped, tag = 'internal scratch']
  %s0 = inlined_call_operand.vmem [shape: f32[16,128], index: 0, kind: input, shape index: {}]
  %s1 = inlined_call_operand.vmem [shape: f32[16,128], index: 1, kind: output, shape index: {}]
  %s2 = sld [smem:[#allocation0]]
  $region48: #{logsqnl.1} parent=0
    _
  %s4 = ssub.s32 1, %s2
  %s5 = scalar_select 0, %s4, %s2
  $region1: #{logsqnl.1} parent=0
    #allocation2 [shape = 'u8[16384]{0}', space=vmem, size = 0x4000, scoped, tag = 'output window, operand 0, single buffered']
    // Predicated region
    $region2: #{logsqnl.1} parent=1 // pred_check
      _
    $region3: #{logsqnl.1} parent=1 // pred_check_branch
      %7 = sbr.rel (0) target = $region5
    $region4: #{logsqnl.1} parent=1 // pred_region
      _
    $region5: #{logsqnl.1} parent=1 // pred_fallthru
      _
    %v8 = vld [vmem:[%s0] sm:$0xff]
    %v9 = vld [vmem:[%s0 + $0x8] sm:$0xff]
    %v10 = vld [vmem:[%s0 + $0x10] sm:$0xff]
    %v11 = vld [vmem:[%s0 + $0x18] sm:$0xff]
    %v12 = vand.u32 2147483647, %v8
    %v13 = vand.u32 2147483647, %v9
    %v14 = vand.u32 2147483647, %v10
    %v15 = vand.u32 2147483647, %v11
    %v16 = vmul.f32 %v12, 0.25
    %v17 = vmul.f32 %v13, 0.25
    %v18 = vmul.f32 %v14, 0.25
    %v19 = vmul.f32 %v15, 0.25
    %v20 = vsub.f32 0.5, %v16
    %v21 = vsub.f32 0.5, %v17
    %v22 = vsub.f32 0.5, %v18
    %v23 = vsub.f32 0.5, %v19
    %v24 = vmul.f32 %v8, %v20
    %v25 = vmul.f32 %v9, %v21
    %v26 = vmul.f32 %v10, %v22
    %v27 = vmul.f32 %v11, %v23
    %v28 = vadd.f32 %v24, 0.5
    %v29 = vadd.f32 %v25, 0.5
    %v30 = vadd.f32 %v26, 0.5
    %v31 = vadd.f32 %v27, 0.5
    %vm32 = vcmp.gt.f32.partialorder %v8, 2.0
    %vm33 = vcmp.gt.f32.partialorder %v9, 2.0
    %vm34 = vcmp.gt.f32.partialorder %v10, 2.0
    %vm35 = vcmp.gt.f32.partialorder %v11, 2.0
    %v36 = vsel %vm32, 1.0, %v28
    %v37 = vsel %vm33, 1.0, %v29
    %v38 = vsel %vm34, 1.0, %v30
    %v39 = vsel %vm35, 1.0, %v31
    %vm40 = vcmp.lt.f32.partialorder %v8, -2.0
    %vm41 = vcmp.lt.f32.partialorder %v9, -2.0
    %vm42 = vcmp.lt.f32.partialorder %v10, -2.0
    %vm43 = vcmp.lt.f32.partialorder %v11, -2.0
    %v44 = vsel %vm40, 0.0, %v36
    %v45 = vsel %vm41, 0.0, %v37
    %v46 = vsel %vm42, 0.0, %v38
    %v47 = vsel %vm43, 0.0, %v39
    %48 = vst [vmem:[#allocation2] sm:$0xff] %v44
    %49 = vst [vmem:[#allocation2 + $0x8] sm:$0xff] %v45
    %50 = vst [vmem:[#allocation2 + $0x10] sm:$0xff] %v46
    %51 = vst [vmem:[#allocation2 + $0x18] sm:$0xff] %v47
    // Predicated region
    $region6: #{logsqnl.1} parent=1 // pred_check
      _
    $region7: #{logsqnl.1} parent=1 // pred_check_branch
      %53 = sbr.rel (0) target = $region9
    $region8: #{logsqnl.1} parent=1 // pred_region
      // Predicated region
      $region10: #{logsqnl.1} parent=8 // pred_check
        _
      $region11: #{logsqnl.1} parent=8 // pred_check_branch
        %55 = sbr.rel (0) target = $region13
      $region12: #{logsqnl.1} parent=8 // pred_region
        // Predicated region
        $region14: #{logsqnl.1} parent=12 // pred_check
          _
        $region15: #{logsqnl.1} parent=12 // pred_check_branch
          %57 = sbr.rel (0) target = $region17
        $region16: #{logsqnl.1} parent=12 // pred_region
          // Predicated region
          $region29: #{logsqnl.1} parent=16 // pred_check
            _
          $region30: #{logsqnl.1} parent=16 // pred_check_branch
            %74 = sbr.rel (0) target = $region32
          $region31: #{logsqnl.1} parent=16 // pred_region
            loop: start=0, step=1, limit=1
            $region33: #{logsqnl.1} parent=31 // loop_pre_header
              _
            $region34: #{logsqnl.1} parent=31 // loop_header
              %s76 = sphi 0, %s80
              %p77 = scmp.ge.s32.totalorder %s76, 1
              %s81 = sphi [#allocation2], [#allocation2]
              %s82 = sphi %s1, %s1
            $region35: #{logsqnl.1} parent=31 // loop_header_branch
              %79 = sbr.rel (%p77) target = $region39
            $region36: #{logsqnl.1} parent=31 // loop_body
              %v83 = vld [vmem:[%s81] sm:$0xff]
              %84 = vst [vmem:[%s82] sm:$0xff] %v83
              %v85 = vld [vmem:[%s81 + $0x8] sm:$0xff]
              %86 = vst [vmem:[%s82 + $0x8] sm:$0xff] %v85
            $region37: #{logsqnl.1} parent=31 // loop_footer
              %s80 = sadd.s32 1, %s76
            $region38: #{logsqnl.1} parent=31 // loop_footer_branch
              %75 = sbr.rel target = $region34
            $region39: #{logsqnl.1} parent=31 // loop_exit
              _
          $region32: #{logsqnl.1} parent=16 // pred_fallthru
            _
          // Predicated region
          $region40: #{logsqnl.1} parent=16 // pred_check
            _
          $region41: #{logsqnl.1} parent=16 // pred_check_branch
            %88 = sbr.rel target = $region43
          $region42: #{logsqnl.1} parent=16 // pred_region
            _
          $region43: #{logsqnl.1} parent=16 // pred_fallthru
            _
        $region17: #{logsqnl.1} parent=12 // pred_fallthru
          _
        // Predicated region
        $region18: #{logsqnl.1} parent=12 // pred_check
          _
        $region19: #{logsqnl.1} parent=12 // pred_check_branch
          %59 = sbr.rel target = $region21
        $region20: #{logsqnl.1} parent=12 // pred_region
          loop: start=0, step=1, limit=1
          $region22: #{logsqnl.1} parent=20 // loop_pre_header
            _
          $region23: #{logsqnl.1} parent=20 // loop_header
            %s62 = sphi 0, %s66
            %p63 = scmp.ge.s32.totalorder %s62, 1
            %s67 = sphi [#allocation2], [#allocation2]
            %s68 = sphi %s1, %s1
          $region24: #{logsqnl.1} parent=20 // loop_header_branch
            %65 = sbr.rel (%p63) target = $region28
          $region25: #{logsqnl.1} parent=20 // loop_body
            %v69 = vld [vmem:[%s67] sm:$0xff]
            %70 = vst [vmem:[%s68] sm:$0xff] %v69
            %v71 = vld [vmem:[%s67 + $0x8] sm:$0xff]
            %72 = vst [vmem:[%s68 + $0x8] sm:$0xff] %v71
          $region26: #{logsqnl.1} parent=20 // loop_footer
            %s66 = sadd.s32 1, %s62
          $region27: #{logsqnl.1} parent=20 // loop_footer_branch
            %61 = sbr.rel target = $region23
          $region28: #{logsqnl.1} parent=20 // loop_exit
            _
        $region21: #{logsqnl.1} parent=12 // pred_fallthru
          _
      $region13: #{logsqnl.1} parent=8 // pred_fallthru
        _
      %89 = vnop
    $region9: #{logsqnl.1} parent=1 // pred_fallthru
      _
    // Predicated region
    $region44: #{logsqnl.1} parent=1 // pred_check
      _
    $region45: #{logsqnl.1} parent=1 // pred_check_branch
      %91 = sbr.rel (0) target = $region47
    $region46: #{logsqnl.1} parent=1 // pred_region
      _
    $region47: #{logsqnl.1} parent=1 // pred_fallthru
      _

</llo_original>
